<compile_context>
chip_gen: v5e
topology: v5e:2x2
jax: 0.10.0
libtpu: 0.0.40
codegen_flags: <defaults>
</compile_context>

<pallas_src>
import functools

import jax
import jax.numpy as jnp
from jax.experimental import pallas as pl
from jax.experimental.pallas import tpu as pltpu


def _round_up(n, m):
    return ((n + m - 1) // m) * m


def _elu(x):
    # torch.nn.ELU(alpha=1.0). The exp argument is clamped so the discarded
    # branch never overflows.  (expm1 would avoid a tiny cancellation just
    # below 0; exp-1 is kept for guaranteed Mosaic lowering — abs error ~1e-7,
    # far below the bf16 operand rounding already present.)
    return jnp.where(x > 0.0, x, jnp.exp(jnp.minimum(x, 0.0)) - 1.0)


def _default_elu_dtype():
    """bf16 ELU on chips with bf16 VALU/EUP (v6e/v7x), f32 elsewhere (v5e...)."""
    kind = jax.devices()[0].device_kind.lower()
    return jnp.bfloat16 if ("v6" in kind or "v7" in kind) else jnp.float32


def _actor_mlp_kernel(x_ref, w1_ref, b1_ref, w2_ref, b2_ref, w3_ref, b3_ref,
                      out_ref, *, elu_dtype):
    # x_ref:  (TB, D_in)   f32  -- one batch tile of (lane-padded) observations
    # wN_ref: (D_k, D_k+1) bf16 -- per-layer padded weights (VMEM resident)
    # bN_ref: (1, D_k+1)   f32  -- per-layer padded biases
    # out_ref:(TB, D_out)  f32/bf16 -- lane-dense output slab
    wt = w1_ref.dtype
    x = x_ref[...].astype(wt)                      # cast in-kernel (free VPU work)

    h = jnp.dot(x, w1_ref[...], preferred_element_type=jnp.float32) + b1_ref[...]
    h = _elu(h.astype(elu_dtype)).astype(wt)
    h = jnp.dot(h, w2_ref[...], preferred_element_type=jnp.float32) + b2_ref[...]
    h = _elu(h.astype(elu_dtype)).astype(wt)
    o = jnp.dot(h, w3_ref[...], preferred_element_type=jnp.float32) + b3_ref[...]
    out_ref[...] = o.astype(out_ref.dtype)


def pack_params(params, *, dtype=jnp.bfloat16):
    """Pad every feature dim to its own multiple of 128 (per-layer widths)."""
    w1, b1, w2, b2, w3, b3 = params
    obs_dim, h1 = w1.shape
    h2 = w2.shape[1]
    act_dim = w3.shape[1]

    d_in = _round_up(obs_dim, 128)
    d_h1 = _round_up(h1, 128)
    d_h2 = _round_up(h2, 128)
    d_out = _round_up(act_dim, 128)

    def pad_w(w, rows, cols):
        return jnp.pad(w, ((0, rows - w.shape[0]), (0, cols - w.shape[1]))).astype(dtype)

    def pad_b(b, cols):
        b = b.reshape(1, -1).astype(jnp.float32)
        return jnp.pad(b, ((0, 0), (0, cols - b.shape[1])))

    return dict(
        w1=pad_w(w1, d_in, d_h1), b1=pad_b(b1, d_h1),
        w2=pad_w(w2, d_h1, d_h2), b2=pad_b(b2, d_h2),
        w3=pad_w(w3, d_h2, d_out), b3=pad_b(b3, d_out),
        dims=(obs_dim, act_dim, d_in, d_out),
    )


def onnx_policy_forward(x, packed, *, batch_tile=1024, out_dtype=jnp.float32,
                        elu_dtype=None):
    """Pallas implementation of _OnnxPolicyExporter.forward(x) (Identity normalizer)."""
    w1, b1 = packed["w1"], packed["b1"]
    w2, b2 = packed["w2"], packed["b2"]
    w3, b3 = packed["w3"], packed["b3"]
    obs_dim, act_dim, d_in, d_out = packed["dims"]

    B = x.shape[0]
    assert x.shape[1] == obs_dim
    if elu_dtype is None:
        elu_dtype = _default_elu_dtype()

    # ---- batch tiling --------------------------------------------------------
    # Enough tiles to (a) cap rows-per-tile at batch_tile and (b) expose >=2
    # "parallel" grid steps for the v7x dual TensorCore when B allows; tb is the
    # smallest sublane-aligned tile covering B/n_tiles, which bounds last-tile
    # padding waste to < 8*n_tiles rows.
    n_tiles = max(pl.cdiv(B, batch_tile), 2 if B >= 16 else 1)
    tb = _round_up(pl.cdiv(B, n_tiles), 8)
    B_pad = n_tiles * tb

    # x stays f32 at its natural width (lane-padded to d_in only); the bf16 cast
    # happens inside the kernel, so no second HBM copy of x is materialized.
    x_pad = jnp.pad(x, ((0, B_pad - B), (0, d_in - obs_dim)))

    # ---- VMEM budget ---------------------------------------------------------
    # Double-buffered x / out tiles + (conservatively double-buffered) resident
    # weight & bias slabs; capped at v7x's 64 MiB physical VMEM.
    out_bytes = jnp.dtype(out_dtype).itemsize
    vmem_need = 2 * tb * d_in * x_pad.dtype.itemsize + 2 * tb * d_out * out_bytes
    for a in (w1, b1, w2, b2, w3, b3):
        vmem_need += 2 * a.size * a.dtype.itemsize
    vmem_limit = min(max(int(1.5 * vmem_need), 32 << 20), 64 << 20)

    kernel = functools.partial(_actor_mlp_kernel, elu_dtype=elu_dtype)

    def resident(a):  # constant index_map -> fetched once, stays VMEM resident
        return pl.BlockSpec(a.shape, lambda i: (0, 0))

    out = pl.pallas_call(
        kernel,
        out_shape=jax.ShapeDtypeStruct((B_pad, d_out), out_dtype),
        grid=(n_tiles,),
        in_specs=[
            pl.BlockSpec((tb, d_in), lambda i: (i, 0)),   # batch tile of x
            resident(w1), resident(b1),
            resident(w2), resident(b2),
            resident(w3), resident(b3),
        ],
        out_specs=pl.BlockSpec((tb, d_out), lambda i: (i, 0)),
        compiler_params=pltpu.CompilerParams(
            dimension_semantics=("parallel",),
            vmem_limit_bytes=vmem_limit,
        ),
    )(x_pad, w1, b1, w2, b2, w3, b3)

    return out[:B, :act_dim]


# ------------------------------ references ----------------------------------
def _reference_forward_f32(x, params):
    w1, b1, w2, b2, w3, b3 = params
    h = _elu(x @ w1 + b1)
    h = _elu(h @ w2 + b2)
    return h @ w3 + b3


def _reference_forward_matched(x, params, elu_dtype):
    """Same precision recipe as the kernel: bf16 operands, f32 MXU accumulation,
    ELU evaluated in elu_dtype."""
    w1, b1, w2, b2, w3, b3 = params
    bf = jnp.bfloat16
    h = jnp.dot(x.astype(bf), w1.astype(bf), preferred_element_type=jnp.float32) + b1
    h = _elu(h.astype(elu_dtype)).astype(bf)
    h = jnp.dot(h, w2.astype(bf), preferred_element_type=jnp.float32) + b2
    h = _elu(h.astype(elu_dtype)).astype(bf)
    return jnp.dot(h, w3.astype(bf), preferred_element_type=jnp.float32) + b3


def _init_params(key, obs_dim, h1, h2, act_dim):
    """Deterministic synthetic params (torch Linear layout, stored (in, out))."""
    ks = jax.random.split(key, 6)

    def lin(kw, kb, fan_in, fan_out):
        bound = 1.0 / jnp.sqrt(fan_in)
        w = jax.random.uniform(kw, (fan_in, fan_out), jnp.float32, -bound, bound)
        b = jax.random.uniform(kb, (1, fan_out), jnp.float32, -bound, bound)
        return w, b

    w1, b1 = lin(ks[0], ks[1], obs_dim, h1)
    w2, b2 = lin(ks[2], ks[3], h1, h2)
    w3, b3 = lin(ks[4], ks[5], h2, act_dim)
    return (w1, b1, w2, b2, w3, b3)


if __name__ == "__main__":
    key = jax.random.PRNGKey(0)
    k_x, k_p = jax.random.split(key)

    batch = 2
    obs_dim = 32    # actor[0].in_features
    hidden1 = 32
    hidden2 = 32
    act_dim = 8

    x = jax.random.normal(k_x, (batch, obs_dim), dtype=jnp.float32)
    params = _init_params(k_p, obs_dim, hidden1, hidden2, act_dim)

    packed = pack_params(params)
    elu_dtype = _default_elu_dtype()

    actions = jax.block_until_ready(
        onnx_policy_forward(x, packed, elu_dtype=elu_dtype))

    ref_matched = _reference_forward_matched(x, params, elu_dtype)
    ref_f32 = _reference_forward_f32(x, params)

    assert actions.shape == (batch, act_dim)
    # Matched-precision reference (bf16 operands, f32 accumulation): tight check.
    assert jnp.allclose(actions, ref_matched, atol=1e-2, rtol=1e-2), \
        "mismatch vs matched-precision reference"
    # Full-f32 reference: loose sanity check (bf16 operand rounding).
    assert jnp.allclose(actions, ref_f32, atol=5e-2, rtol=5e-2), \
        "mismatch vs f32 reference"

    print("KERNEL_OK")
</pallas_src>

<mosaic_0001>
module attributes {stable_mosaic.version = 11 : i64} {
  func.func @_actor_mlp_kernel(%arg0: i32, %arg1: memref<8x128xf32, #tpu.memory_space<vmem>>, %arg2: memref<128x128xbf16, #tpu.memory_space<vmem>>, %arg3: memref<1x128xf32, #tpu.memory_space<vmem>>, %arg4: memref<128x128xbf16, #tpu.memory_space<vmem>>, %arg5: memref<1x128xf32, #tpu.memory_space<vmem>>, %arg6: memref<128x128xbf16, #tpu.memory_space<vmem>>, %arg7: memref<1x128xf32, #tpu.memory_space<vmem>>, %arg8: memref<8x128xf32, #tpu.memory_space<vmem>>) attributes {dimension_semantics = [#tpu.dimension_semantics<parallel>], iteration_bounds = array<i64: 1>, scalar_prefetch = 0 : i64, scratch_operands = 0 : i64, tpu.core_type = #tpu.core_type<tc>, window_params = [{transform_indices = @transform_0, window_bounds = array<i64: 8, 128>}, {pipeline_mode = #tpu.pipeline_mode<synchronous>, transform_indices = @transform_1, window_bounds = array<i64: 128, 128>}, {pipeline_mode = #tpu.pipeline_mode<synchronous>, transform_indices = @transform_2, window_bounds = array<i64: 1, 128>}, {pipeline_mode = #tpu.pipeline_mode<synchronous>, transform_indices = @transform_3, window_bounds = array<i64: 128, 128>}, {pipeline_mode = #tpu.pipeline_mode<synchronous>, transform_indices = @transform_4, window_bounds = array<i64: 1, 128>}, {pipeline_mode = #tpu.pipeline_mode<synchronous>, transform_indices = @transform_5, window_bounds = array<i64: 128, 128>}, {pipeline_mode = #tpu.pipeline_mode<synchronous>, transform_indices = @transform_6, window_bounds = array<i64: 1, 128>}, {transform_indices = @transform_7, window_bounds = array<i64: 8, 128>}]} {
    %c0 = arith.constant 0 : index
    %c0_0 = arith.constant 0 : index
    %0 = vector.load %arg1[%c0, %c0_0] : memref<8x128xf32, #tpu.memory_space<vmem>>, vector<8x128xf32>
    %1 = arith.truncf %0 : vector<8x128xf32> to vector<8x128xbf16>
    %c0_1 = arith.constant 0 : index
    %c0_2 = arith.constant 0 : index
    %2 = vector.load %arg2[%c0_1, %c0_2] : memref<128x128xbf16, #tpu.memory_space<vmem>>, vector<128x128xbf16>
    %cst = arith.constant dense<0.000000e+00> : vector<8x128xf32>
    %3 = tpu.matmul %1, %2, %cst {dimension_numbers = #tpu.dot_dimension_numbers<[1], [0], [0], [1], [0, 0, 1, 1], [], []>} : vector<8x128xbf16>, vector<128x128xbf16>, vector<8x128xf32> -> vector<8x128xf32>
    %c0_3 = arith.constant 0 : index
    %c0_4 = arith.constant 0 : index
    %4 = vector.load %arg3[%c0_3, %c0_4] : memref<1x128xf32, #tpu.memory_space<vmem>>, vector<1x128xf32>
    %5 = vector.broadcast %4 : vector<1x128xf32> to vector<8x128xf32>
    %6 = arith.addf %3, %5 : vector<8x128xf32>
    %cst_5 = arith.constant 0.000000e+00 : f32
    %7 = vector.broadcast %cst_5 : f32 to vector<8x128xf32>
    %8 = arith.cmpf ogt, %6, %7 : vector<8x128xf32>
    %cst_6 = arith.constant 0.000000e+00 : f32
    %9 = vector.broadcast %cst_6 : f32 to vector<8x128xf32>
    %10 = arith.minimumf %6, %9 : vector<8x128xf32>
    %11 = math.exp %10 : vector<8x128xf32>
    %cst_7 = arith.constant 1.000000e+00 : f32
    %12 = vector.broadcast %cst_7 : f32 to vector<8x128xf32>
    %13 = arith.subf %11, %12 : vector<8x128xf32>
    %14 = arith.select %8, %6, %13 : vector<8x128xi1>, vector<8x128xf32>
    %15 = arith.truncf %14 : vector<8x128xf32> to vector<8x128xbf16>
    %c0_8 = arith.constant 0 : index
    %c0_9 = arith.constant 0 : index
    %16 = vector.load %arg4[%c0_8, %c0_9] : memref<128x128xbf16, #tpu.memory_space<vmem>>, vector<128x128xbf16>
    %cst_10 = arith.constant dense<0.000000e+00> : vector<8x128xf32>
    %17 = tpu.matmul %15, %16, %cst_10 {dimension_numbers = #tpu.dot_dimension_numbers<[1], [0], [0], [1], [0, 0, 1, 1], [], []>} : vector<8x128xbf16>, vector<128x128xbf16>, vector<8x128xf32> -> vector<8x128xf32>
    %c0_11 = arith.constant 0 : index
    %c0_12 = arith.constant 0 : index
    %18 = vector.load %arg5[%c0_11, %c0_12] : memref<1x128xf32, #tpu.memory_space<vmem>>, vector<1x128xf32>
    %19 = vector.broadcast %18 : vector<1x128xf32> to vector<8x128xf32>
    %20 = arith.addf %17, %19 : vector<8x128xf32>
    %cst_13 = arith.constant 0.000000e+00 : f32
    %21 = vector.broadcast %cst_13 : f32 to vector<8x128xf32>
    %22 = arith.cmpf ogt, %20, %21 : vector<8x128xf32>
    %cst_14 = arith.constant 0.000000e+00 : f32
    %23 = vector.broadcast %cst_14 : f32 to vector<8x128xf32>
    %24 = arith.minimumf %20, %23 : vector<8x128xf32>
    %25 = math.exp %24 : vector<8x128xf32>
    %cst_15 = arith.constant 1.000000e+00 : f32
    %26 = vector.broadcast %cst_15 : f32 to vector<8x128xf32>
    %27 = arith.subf %25, %26 : vector<8x128xf32>
    %28 = arith.select %22, %20, %27 : vector<8x128xi1>, vector<8x128xf32>
    %29 = arith.truncf %28 : vector<8x128xf32> to vector<8x128xbf16>
    %c0_16 = arith.constant 0 : index
    %c0_17 = arith.constant 0 : index
    %30 = vector.load %arg6[%c0_16, %c0_17] : memref<128x128xbf16, #tpu.memory_space<vmem>>, vector<128x128xbf16>
    %cst_18 = arith.constant dense<0.000000e+00> : vector<8x128xf32>
    %31 = tpu.matmul %29, %30, %cst_18 {dimension_numbers = #tpu.dot_dimension_numbers<[1], [0], [0], [1], [0, 0, 1, 1], [], []>} : vector<8x128xbf16>, vector<128x128xbf16>, vector<8x128xf32> -> vector<8x128xf32>
    %c0_19 = arith.constant 0 : index
    %c0_20 = arith.constant 0 : index
    %32 = vector.load %arg7[%c0_19, %c0_20] : memref<1x128xf32, #tpu.memory_space<vmem>>, vector<1x128xf32>
    %33 = vector.broadcast %32 : vector<1x128xf32> to vector<8x128xf32>
    %34 = arith.addf %31, %33 : vector<8x128xf32>
    %c0_21 = arith.constant 0 : index
    %c0_22 = arith.constant 0 : index
    %35 = vector.load %arg8[%c0_21, %c0_22] : memref<8x128xf32, #tpu.memory_space<vmem>>, vector<8x128xf32>
    tpu.vector_store %arg8[%c0_21, %c0_22], %34 {strides = array<i32>} : memref<8x128xf32, #tpu.memory_space<vmem>>, vector<8x128xf32>,
    return
  }
  func.func @transform_0(%arg0: i32) -> (i32, i32) {
    %c0_i32 = arith.constant 0 : i32
    %c0_i32_0 = arith.constant 0 : i32
    return %arg0, %c0_i32 : i32, i32
  }
  func.func @transform_1(%arg0: i32) -> (i32, i32) {
    %c0_i32 = arith.constant 0 : i32
    %c0_i32_0 = arith.constant 0 : i32
    %c0_i32_1 = arith.constant 0 : i32
    return %c0_i32, %c0_i32_0 : i32, i32
  }
  func.func @transform_2(%arg0: i32) -> (i32, i32) {
    %c0_i32 = arith.constant 0 : i32
    %c0_i32_0 = arith.constant 0 : i32
    %c0_i32_1 = arith.constant 0 : i32
    return %c0_i32, %c0_i32_0 : i32, i32
  }
  func.func @transform_3(%arg0: i32) -> (i32, i32) {
    %c0_i32 = arith.constant 0 : i32
    %c0_i32_0 = arith.constant 0 : i32
    %c0_i32_1 = arith.constant 0 : i32
    return %c0_i32, %c0_i32_0 : i32, i32
  }
  func.func @transform_4(%arg0: i32) -> (i32, i32) {
    %c0_i32 = arith.constant 0 : i32
    %c0_i32_0 = arith.constant 0 : i32
    %c0_i32_1 = arith.constant 0 : i32
    return %c0_i32, %c0_i32_0 : i32, i32
  }
  func.func @transform_5(%arg0: i32) -> (i32, i32) {
    %c0_i32 = arith.constant 0 : i32
    %c0_i32_0 = arith.constant 0 : i32
    %c0_i32_1 = arith.constant 0 : i32
    return %c0_i32, %c0_i32_0 : i32, i32
  }
  func.func @transform_6(%arg0: i32) -> (i32, i32) {
    %c0_i32 = arith.constant 0 : i32
    %c0_i32_0 = arith.constant 0 : i32
    %c0_i32_1 = arith.constant 0 : i32
    return %c0_i32, %c0_i32_0 : i32, i32
  }
  func.func @transform_7(%arg0: i32) -> (i32, i32) {
    %c0_i32 = arith.constant 0 : i32
    %c0_i32_0 = arith.constant 0 : i32
    return %arg0, %c0_i32 : i32, i32
  }
}

</mosaic_0001>

<llo_original>
// kernel: tpu_custom_call.1
$region0: #{tpu_custom_call.1}
  #allocation0 [shape = 'u32[]', space=smem, size = 0x4, offset = 0x4, fixed_abs, tag = 'smem constant byte address 0x4 - core index']
  #allocation1 [shape = 'u32[72,128]{1,0:T(1,128)}', space=vmem, size = 0x9000, scoped, tag = 'internal scratch']
  %s0 = inlined_call_operand.hbm [shape: f32[8,128], index: 0, kind: input, shape index: {}]
  %s1 = inlined_call_operand.hbm [shape: bf16[128,128], index: 1, kind: input, shape index: {}]
  %s2 = inlined_call_operand.vmem [shape: f32[1,128], index: 2, kind: input, shape index: {}]
  %s3 = inlined_call_operand.hbm [shape: bf16[128,128], index: 3, kind: input, shape index: {}]
  %s4 = inlined_call_operand.vmem [shape: f32[1,128], index: 4, kind: input, shape index: {}]
  %s5 = inlined_call_operand.hbm [shape: bf16[128,128], index: 5, kind: input, shape index: {}]
  %s6 = inlined_call_operand.vmem [shape: f32[1,128], index: 6, kind: input, shape index: {}]
  %s7 = inlined_call_operand.hbm [shape: f32[8,128], index: 7, kind: output, shape index: {}]
  %s8 = sld [smem:[#allocation0]]
  $region54: #{tpu_custom_call.1} parent=0
    _
  %s10 = ssub.s32 1, %s8
  %s11 = scalar_select 0, %s10, %s8
  $region1: #{tpu_custom_call.1} parent=0
    #allocation2 [shape = 'u8[4096]{0}', space=vmem, size = 0x1000, scoped, tag = 'input window, operand 0, single buffered']
    #allocation3 [shape = 's32[1]{0}', space=sflag, size = 0x4, scoped, tag = 'scoped memory for tpu_custom_call.1']
    #allocation4 [shape = 's32[1]{0}', space=sflag, size = 0x4, scoped, tag = 'scoped memory for tpu_custom_call.1']
    #allocation5 [shape = 'u8[32768]{0}', space=vmem, size = 0x8000, scoped, tag = 'input window, operand 1, single buffered']
    #allocation6 [shape = 's32[1]{0}', space=sflag, size = 0x4, scoped, tag = 'scoped memory for tpu_custom_call.1']
    #allocation7 [shape = 'u8[32768]{0}', space=vmem, size = 0x8000, scoped, tag = 'input window, operand 3, single buffered']
    #allocation8 [shape = 'u8[32768]{0}', space=vmem, size = 0x8000, scoped, tag = 'input window, operand 5, single buffered']
    #allocation9 [shape = 's32[1]{0}', space=sflag, size = 0x4, scoped, tag = 'scoped memory for tpu_custom_call.1']
    #allocation10 [shape = 'u8[4096]{0}', space=vmem, size = 0x1000, scoped, tag = 'output window, operand 0, single buffered']
    %12 = vsyncpa [#allocation3], 0
    %13 = vsyncpa [#allocation6], 0
    %14 = vsyncpa [#allocation9], 0
    %15 = vsyncpa [#allocation4], 0
    // Predicated region
    $region2: #{tpu_custom_call.1} parent=1 // pred_check
      _
    $region3: #{tpu_custom_call.1} parent=1 // pred_check_branch
      %17 = sbr.rel (0) target = $region5
    $region4: #{tpu_custom_call.1} parent=1 // pred_region
      %19 = vsyncadd [#allocation3], 0
      %s21 = sshll.u32 %s0, 4
      %s22 = int_to_ptr.hbm [resolvable:$true] %s21
      %s23 = sshll.u32 [#allocation2], 4
      %s24 = int_to_ptr.vmem [resolvable:$true] %s23
      %26 = dma.hbm_to_vmem [thread:$0]  %s22, 128, %s24, [#allocation3]
    $region5: #{tpu_custom_call.1} parent=1 // pred_fallthru
      _
    // Predicated region
    $region6: #{tpu_custom_call.1} parent=1 // pred_check
      _
    $region7: #{tpu_custom_call.1} parent=1 // pred_check_branch
      %28 = sbr.rel (0) target = $region9
    $region8: #{tpu_custom_call.1} parent=1 // pred_region
      %30 = vsyncadd [#allocation6], 0
      %s31 = sshll.u32 %s1, 4
      %s32 = int_to_ptr.hbm [resolvable:$true] %s31
      %s33 = sshll.u32 [#allocation5], 4
      %s34 = int_to_ptr.vmem [resolvable:$true] %s33
      %39 = dma.hbm_to_vmem [thread:$0]  %s32, 1024, %s34, [#allocation6], 64, 64, 4
    $region9: #{tpu_custom_call.1} parent=1 // pred_fallthru
      _
    // Predicated region
    $region10: #{tpu_custom_call.1} parent=1 // pred_check
      _
    $region11: #{tpu_custom_call.1} parent=1 // pred_check_branch
      %41 = sbr.rel (0) target = $region13
    $region12: #{tpu_custom_call.1} parent=1 // pred_region
      _
    $region13: #{tpu_custom_call.1} parent=1 // pred_fallthru
      _
    // Predicated region
    $region14: #{tpu_custom_call.1} parent=1 // pred_check
      _
    $region15: #{tpu_custom_call.1} parent=1 // pred_check_branch
      %43 = sbr.rel (0) target = $region17
    $region16: #{tpu_custom_call.1} parent=1 // pred_region
      %45 = vsyncadd [#allocation6], 0
      %s46 = sshll.u32 %s3, 4
      %s47 = int_to_ptr.hbm [resolvable:$true] %s46
      %s48 = sshll.u32 [#allocation7], 4
      %s49 = int_to_ptr.vmem [resolvable:$true] %s48
      %54 = dma.hbm_to_vmem [thread:$0]  %s47, 1024, %s49, [#allocation6], 64, 64, 4
    $region17: #{tpu_custom_call.1} parent=1 // pred_fallthru
      _
    // Predicated region
    $region18: #{tpu_custom_call.1} parent=1 // pred_check
      _
    $region19: #{tpu_custom_call.1} parent=1 // pred_check_branch
      %56 = sbr.rel (0) target = $region21
    $region20: #{tpu_custom_call.1} parent=1 // pred_region
      _
    $region21: #{tpu_custom_call.1} parent=1 // pred_fallthru
      _
    // Predicated region
    $region22: #{tpu_custom_call.1} parent=1 // pred_check
      _
    $region23: #{tpu_custom_call.1} parent=1 // pred_check_branch
      %58 = sbr.rel (0) target = $region25
    $region24: #{tpu_custom_call.1} parent=1 // pred_region
      %60 = vsyncadd [#allocation9], 0
      %s61 = sshll.u32 %s5, 4
      %s62 = int_to_ptr.hbm [resolvable:$true] %s61
      %s63 = sshll.u32 [#allocation8], 4
      %s64 = int_to_ptr.vmem [resolvable:$true] %s63
      %69 = dma.hbm_to_vmem [thread:$0]  %s62, 1024, %s64, [#allocation9], 64, 64, 4
    $region25: #{tpu_custom_call.1} parent=1 // pred_fallthru
      _
    // Predicated region
    $region26: #{tpu_custom_call.1} parent=1 // pred_check
      _
    $region27: #{tpu_custom_call.1} parent=1 // pred_check_branch
      %71 = sbr.rel (0) target = $region29
    $region28: #{tpu_custom_call.1} parent=1 // pred_region
      _
    $region29: #{tpu_custom_call.1} parent=1 // pred_fallthru
      _
    // Predicated region
    $region30: #{tpu_custom_call.1} parent=1 // pred_check
      _
    $region31: #{tpu_custom_call.1} parent=1 // pred_check_branch
      %73 = sbr.rel (0) target = $region33
    $region32: #{tpu_custom_call.1} parent=1 // pred_region
      %75 = dma.done [#allocation3], 128
    $region33: #{tpu_custom_call.1} parent=1 // pred_fallthru
      _
    // Predicated region
    $region34: #{tpu_custom_call.1} parent=1 // pred_check
      _
    $region35: #{tpu_custom_call.1} parent=1 // pred_check_branch
      %77 = sbr.rel (0) target = $region37
    $region36: #{tpu_custom_call.1} parent=1 // pred_region
      %79 = dma.done [#allocation6], 1024
    $region37: #{tpu_custom_call.1} parent=1 // pred_fallthru
      _
    // Predicated region
    $region38: #{tpu_custom_call.1} parent=1 // pred_check
      _
    $region39: #{tpu_custom_call.1} parent=1 // pred_check_branch
      %81 = sbr.rel (0) target = $region41
    $region40: #{tpu_custom_call.1} parent=1 // pred_region
      %83 = dma.done [#allocation6], 1024
    $region41: #{tpu_custom_call.1} parent=1 // pred_fallthru
      _
    // Predicated region
    $region42: #{tpu_custom_call.1} parent=1 // pred_check
      _
    $region43: #{tpu_custom_call.1} parent=1 // pred_check_branch
      %85 = sbr.rel (0) target = $region45
    $region44: #{tpu_custom_call.1} parent=1 // pred_region
      %87 = dma.done [#allocation9], 1024
    $region45: #{tpu_custom_call.1} parent=1 // pred_fallthru
      _
    %v88 = vld [vmem:[#allocation2] sm:$0xff]
    %v89 = vpack.c.bf16 %v88, %v88
    %v90 = vld [vmem:[#allocation5] sm:$0xf]
    %v91 = vld [vmem:[#allocation5 + $0x4] sm:$0xf]
    %v92 = vld [vmem:[#allocation5 + $0x8] sm:$0xf]
    %v93 = vld [vmem:[#allocation5 + $0xc] sm:$0xf]
    %v94 = vld [vmem:[#allocation5 + $0x10] sm:$0xf]
    %v95 = vld [vmem:[#allocation5 + $0x14] sm:$0xf]
    %v96 = vld [vmem:[#allocation5 + $0x18] sm:$0xf]
    %v97 = vld [vmem:[#allocation5 + $0x1c] sm:$0xf]
    %v98 = vld [vmem:[#allocation5 + $0x20] sm:$0xf]
    %v99 = vld [vmem:[#allocation5 + $0x24] sm:$0xf]
    %v100 = vld [vmem:[#allocation5 + $0x28] sm:$0xf]
    %v101 = vld [vmem:[#allocation5 + $0x2c] sm:$0xf]
    %v102 = vld [vmem:[#allocation5 + $0x30] sm:$0xf]
    %v103 = vld [vmem:[#allocation5 + $0x34] sm:$0xf]
    %v104 = vld [vmem:[#allocation5 + $0x38] sm:$0xf]
    %v105 = vld [vmem:[#allocation5 + $0x3c] sm:$0xf]
    %v106 = vld [vmem:[%s2] sm:$0x1]
    %v108 = vperm.slane %v106, 0
    %v126 = vunpack.c.l.b16 %v90
    %v127 = vunpack.c.l.b16 %v91
    %v128 = vunpack.c.l.b16 %v92
    %v129 = vunpack.c.l.b16 %v93
    %v130 = vunpack.c.l.b16 %v94
    %v131 = vunpack.c.l.b16 %v95
    %v132 = vunpack.c.l.b16 %v96
    %v133 = vunpack.c.l.b16 %v97
    %v134 = vunpack.c.l.b16 %v98
    %v135 = vunpack.c.l.b16 %v99
    %v136 = vunpack.c.l.b16 %v100
    %v137 = vunpack.c.l.b16 %v101
    %v138 = vunpack.c.l.b16 %v102
    %v139 = vunpack.c.l.b16 %v103
    %v140 = vunpack.c.l.b16 %v104
    %v141 = vunpack.c.l.b16 %v105
    %v142 = vpack.c.b16 %v127, %v126
    %v143 = vpack.c.b16 %v129, %v128
    %v144 = vpack.c.b16 %v131, %v130
    %v145 = vpack.c.b16 %v133, %v132
    %v146 = vpack.c.b16 %v135, %v134
    %v147 = vpack.c.b16 %v137, %v136
    %v148 = vpack.c.b16 %v139, %v138
    %v149 = vpack.c.b16 %v141, %v140
    %158 = vmatpush.bf16.msra.mxu0 %v149
    %159 = vmatpush.bf16.msra.mxu0 %v148
    %160 = vmatpush.bf16.msra.mxu0 %v147
    %161 = vmatpush.bf16.msra.mxu0 %v146
    %162 = vmatpush.bf16.msra.mxu0 %v145
    %163 = vmatpush.bf16.msra.mxu0 %v144
    %164 = vmatpush.bf16.msra.mxu0 %v143
    %165 = vmatpush.bf16.msra.mxu0 %v142
    %166 = vmatmul.bf16.gmra.mxu0 %v89
    %v167 = vpop.f32.mrf.mxu0
    %v168 = vadd.f32 %v108, %v167
    %v169 = vpop.f32.mrf.mxu0
    %170 = vdwg.mxu0
    %vm171 = vcmp.gt.f32.partialorder %v168, 0.0
    %v172 = vmin.f32 %v168, 0.0
    %v173 = vmul.f32 %v172, 1.442695
    %v174 = vpow.pop %v173
    %v175 = vsub.f32 %v174, 1.0
    %v176 = vsel %vm171, %v168, %v175
    %v177 = vpack.c.bf16 %v176, %v176
    %v178 = vld [vmem:[#allocation7] sm:$0xf]
    %v179 = vld [vmem:[#allocation7 + $0x4] sm:$0xf]
    %v180 = vld [vmem:[#allocation7 + $0x8] sm:$0xf]
    %v181 = vld [vmem:[#allocation7 + $0xc] sm:$0xf]
    %v182 = vld [vmem:[#allocation7 + $0x10] sm:$0xf]
    %v183 = vld [vmem:[#allocation7 + $0x14] sm:$0xf]
    %v184 = vld [vmem:[#allocation7 + $0x18] sm:$0xf]
    %v185 = vld [vmem:[#allocation7 + $0x1c] sm:$0xf]
    %v186 = vld [vmem:[#allocation7 + $0x20] sm:$0xf]
    %v187 = vld [vmem:[#allocation7 + $0x24] sm:$0xf]
    %v188 = vld [vmem:[#allocation7 + $0x28] sm:$0xf]
    %v189 = vld [vmem:[#allocation7 + $0x2c] sm:$0xf]
    %v190 = vld [vmem:[#allocation7 + $0x30] sm:$0xf]
    %v191 = vld [vmem:[#allocation7 + $0x34] sm:$0xf]
    %v192 = vld [vmem:[#allocation7 + $0x38] sm:$0xf]
    %v193 = vld [vmem:[#allocation7 + $0x3c] sm:$0xf]
    %v194 = vld [vmem:[%s4] sm:$0x1]
    %v196 = vperm.slane %v194, 0
    %v214 = vunpack.c.l.b16 %v178
    %v215 = vunpack.c.l.b16 %v179
    %v216 = vunpack.c.l.b16 %v180
    %v217 = vunpack.c.l.b16 %v181
    %v218 = vunpack.c.l.b16 %v182
    %v219 = vunpack.c.l.b16 %v183
    %v220 = vunpack.c.l.b16 %v184
    %v221 = vunpack.c.l.b16 %v185
    %v222 = vunpack.c.l.b16 %v186
    %v223 = vunpack.c.l.b16 %v187
    %v224 = vunpack.c.l.b16 %v188
    %v225 = vunpack.c.l.b16 %v189
    %v226 = vunpack.c.l.b16 %v190
    %v227 = vunpack.c.l.b16 %v191
    %v228 = vunpack.c.l.b16 %v192
    %v229 = vunpack.c.l.b16 %v193
    %v230 = vpack.c.b16 %v215, %v214
    %v231 = vpack.c.b16 %v217, %v216
    %v232 = vpack.c.b16 %v219, %v218
    %v233 = vpack.c.b16 %v221, %v220
    %v234 = vpack.c.b16 %v223, %v222
    %v235 = vpack.c.b16 %v225, %v224
    %v236 = vpack.c.b16 %v227, %v226
    %v237 = vpack.c.b16 %v229, %v228
    %246 = vmatpush.bf16.msra.mxu0 %v237
    %247 = vmatpush.bf16.msra.mxu0 %v236
    %248 = vmatpush.bf16.msra.mxu0 %v235
    %249 = vmatpush.bf16.msra.mxu0 %v234
    %250 = vmatpush.bf16.msra.mxu0 %v233
    %251 = vmatpush.bf16.msra.mxu0 %v232
    %252 = vmatpush.bf16.msra.mxu0 %v231
    %253 = vmatpush.bf16.msra.mxu0 %v230
    %254 = vmatmul.bf16.gmra.mxu0 %v177
    %v255 = vpop.f32.mrf.mxu0
    %v256 = vadd.f32 %v196, %v255
    %v257 = vpop.f32.mrf.mxu0
    %258 = vdwg.mxu0
    %vm259 = vcmp.gt.f32.partialorder %v256, 0.0
    %v260 = vmin.f32 %v256, 0.0
    %v261 = vmul.f32 %v260, 1.442695
    %v262 = vpow.pop %v261
    %v263 = vsub.f32 %v262, 1.0
    %v264 = vsel %vm259, %v256, %v263
    %v265 = vpack.c.bf16 %v264, %v264
    %v266 = vld [vmem:[#allocation8] sm:$0xf]
    %v267 = vld [vmem:[#allocation8 + $0x4] sm:$0xf]
    %v268 = vld [vmem:[#allocation8 + $0x8] sm:$0xf]
    %v269 = vld [vmem:[#allocation8 + $0xc] sm:$0xf]
    %v270 = vld [vmem:[#allocation8 + $0x10] sm:$0xf]
    %v271 = vld [vmem:[#allocation8 + $0x14] sm:$0xf]
    %v272 = vld [vmem:[#allocation8 + $0x18] sm:$0xf]
    %v273 = vld [vmem:[#allocation8 + $0x1c] sm:$0xf]
    %v274 = vld [vmem:[#allocation8 + $0x20] sm:$0xf]
    %v275 = vld [vmem:[#allocation8 + $0x24] sm:$0xf]
    %v276 = vld [vmem:[#allocation8 + $0x28] sm:$0xf]
    %v277 = vld [vmem:[#allocation8 + $0x2c] sm:$0xf]
    %v278 = vld [vmem:[#allocation8 + $0x30] sm:$0xf]
    %v279 = vld [vmem:[#allocation8 + $0x34] sm:$0xf]
    %v280 = vld [vmem:[#allocation8 + $0x38] sm:$0xf]
    %v281 = vld [vmem:[#allocation8 + $0x3c] sm:$0xf]
    %v282 = vld [vmem:[%s6] sm:$0x1]
    %v284 = vperm.slane %v282, 0
    %v302 = vunpack.c.l.b16 %v266
    %v303 = vunpack.c.l.b16 %v267
    %v304 = vunpack.c.l.b16 %v268
    %v305 = vunpack.c.l.b16 %v269
    %v306 = vunpack.c.l.b16 %v270
    %v307 = vunpack.c.l.b16 %v271
    %v308 = vunpack.c.l.b16 %v272
    %v309 = vunpack.c.l.b16 %v273
    %v310 = vunpack.c.l.b16 %v274
    %v311 = vunpack.c.l.b16 %v275
    %v312 = vunpack.c.l.b16 %v276
    %v313 = vunpack.c.l.b16 %v277
    %v314 = vunpack.c.l.b16 %v278
    %v315 = vunpack.c.l.b16 %v279
    %v316 = vunpack.c.l.b16 %v280
    %v317 = vunpack.c.l.b16 %v281
    %v318 = vpack.c.b16 %v303, %v302
    %v319 = vpack.c.b16 %v305, %v304
    %v320 = vpack.c.b16 %v307, %v306
    %v321 = vpack.c.b16 %v309, %v308
    %v322 = vpack.c.b16 %v311, %v310
    %v323 = vpack.c.b16 %v313, %v312
    %v324 = vpack.c.b16 %v315, %v314
    %v325 = vpack.c.b16 %v317, %v316
    %334 = vmatpush.bf16.msra.mxu0 %v325
    %335 = vmatpush.bf16.msra.mxu0 %v324
    %336 = vmatpush.bf16.msra.mxu0 %v323
    %337 = vmatpush.bf16.msra.mxu0 %v322
    %338 = vmatpush.bf16.msra.mxu0 %v321
    %339 = vmatpush.bf16.msra.mxu0 %v320
    %340 = vmatpush.bf16.msra.mxu0 %v319
    %341 = vmatpush.bf16.msra.mxu0 %v318
    %342 = vmatmul.bf16.gmra.mxu0 %v265
    %v343 = vpop.f32.mrf.mxu0
    %v344 = vadd.f32 %v284, %v343
    %v345 = vpop.f32.mrf.mxu0
    %346 = vdwg.mxu0
    %347 = vst [vmem:[#allocation10] sm:$0xff] %v344
    // Predicated region
    $region46: #{tpu_custom_call.1} parent=1 // pred_check
      _
    $region47: #{tpu_custom_call.1} parent=1 // pred_check_branch
      %349 = sbr.rel (0) target = $region49
    $region48: #{tpu_custom_call.1} parent=1 // pred_region
      %351 = vsyncadd [#allocation4], 0
      %s353 = sshll.u32 [#allocation10], 4
      %s354 = int_to_ptr.vmem [resolvable:$true] %s353
      %s355 = sshll.u32 %s7, 4
      %s356 = int_to_ptr.hbm [resolvable:$true] %s355
      %358 = dma.vmem_to_hbm [thread:$0]  %s354, 128, %s356, [#allocation4]
    $region49: #{tpu_custom_call.1} parent=1 // pred_fallthru
      _
    // Predicated region
    $region50: #{tpu_custom_call.1} parent=1 // pred_check
      _
    $region51: #{tpu_custom_call.1} parent=1 // pred_check_branch
      %360 = sbr.rel (0) target = $region53
    $region52: #{tpu_custom_call.1} parent=1 // pred_region
      %362 = dma.done [#allocation4], 128
    $region53: #{tpu_custom_call.1} parent=1 // pred_fallthru
      _
    %363 = vsyncpa [#allocation3], 1
    %364 = vsyncpa [#allocation6], 1
    %365 = vsyncpa [#allocation9], 1
    %366 = vsyncpa [#allocation4], 1

</llo_original>
